<compile_context>
chip_gen: v7x
topology: tpu7x:2x2x1
jax: 0.10.0
libtpu: 0.0.40
codegen_flags: <defaults>
</compile_context>

<pallas_src>
import jax
import jax.numpy as jnp
from jax import lax
from jax.experimental import pallas as pl
from jax.experimental.pallas import tpu as pltpu

# ----- config (mirrors config['hidden_size'], config['kernel_size']) -------
BATCH = 2
SEQ = 16
HIDDEN = 32
KERNEL = 3
PAD = (KERNEL - 1) // 2
ROWS = BATCH * SEQ          # flat (b, s) row count


def conv1d_kernel(x_ref, w_ref, o_ref):
    """x_ref: (B*S, H) activations, rows in (b, s) row-major order.
    w_ref: (K*H, H) pre-concatenated weight taps.
    o_ref: (B*S, H)."""
    x = x_ref[...]
    # Row index r = b*SEQ + s (iota along the sublane dim; TPU needs >= 2-D).
    r = lax.broadcasted_iota(jnp.int32, (ROWS, 1), 0)

    taps = []
    for j in range(KERNEL):                       # static, K = 3
        off = j - PAD                             # tap j reads x[b, s + off]
        if off == 0:
            taps.append(x)
            continue
        # Circular sublane roll puts x[r + off] into row r (XLU slot, cheap).
        shifted = pltpu.roll(x, (-off) % ROWS, axis=0)
        # Zero the rows whose source falls outside [0, SEQ): this IS the
        # Conv1d "same" zero padding, folded into the kernel, and it also
        # kills cross-batch leakage from the circular wrap.  Only B*|off|
        # rows per tap are affected, so plain compares on the iota suffice
        # (no modulo / division needed).
        valid = None
        for b in range(BATCH):
            for s in range(SEQ):
                if not 0 <= s + off < SEQ:
                    c = r != (b * SEQ + s)
                    valid = c if valid is None else valid & c
        taps.append(jnp.where(valid, shifted, 0.0))

    # im2col window matrix, fully vectorized over batch: (B*S, K*H).
    xw = jnp.concatenate(taps, axis=-1)
    # Single fused MXU push for all K taps: (B*S, K*H) @ (K*H, H).
    o_ref[...] = jnp.dot(xw, w_ref[...], preferred_element_type=jnp.float32)


def prepare_conv_weight(weight):
    """One-time (parameter-load-time) repack of the PyTorch (C_out, C_in, K)
    Conv1d weight into the (K*H, H) slab the kernel consumes.  Hoisted out of
    the forward path so each forward call launches only the Pallas kernel."""
    # Row-block j of w_cat is weight[:, :, j].T, matching lane-block j of the
    # in-kernel im2col windows.
    return jnp.concatenate([weight[:, :, j].T for j in range(KERNEL)], axis=0)


@jax.jit
def cnn_forward(x, w_cat):
    """x: (B, S, H) fp32.  w_cat: (K*H, H) fp32 (from prepare_conv_weight).

    Returns (B, S, H) == conv1d(x.transpose(1, 2)).transpose(1, 2).
    """
    # Row-major flatten of the (B, S) dims is a free bitcast under jit.
    x_flat = x.reshape(BATCH * SEQ, HIDDEN)
    out_flat = pl.pallas_call(
        conv1d_kernel,
        out_shape=jax.ShapeDtypeStruct((BATCH * SEQ, HIDDEN), jnp.float32),
        # Gridless / no BlockSpecs: the whole problem is one VMEM-resident
        # block (~20 KB), so no per-grid-step pipeline overhead.
    )(x_flat, w_cat)
    return out_flat.reshape(BATCH, SEQ, HIDDEN)


if __name__ == "__main__":
    key = jax.random.PRNGKey(0)
    kx, kw = jax.random.split(key)
    x = jax.random.normal(kx, (BATCH, SEQ, HIDDEN), dtype=jnp.float32)
    # PyTorch Conv1d weight layout: (C_out, C_in, K), no bias.
    weight = 0.05 * jax.random.normal(kw, (HIDDEN, HIDDEN, KERNEL),
                                      dtype=jnp.float32)

    # Parameter-load-time repack (hoisted out of the per-call forward path).
    w_cat = jax.block_until_ready(prepare_conv_weight(weight))

    out = jax.block_until_ready(cnn_forward(x, w_cat))
    assert out.shape == (BATCH, SEQ, HIDDEN), out.shape
    assert out.dtype == jnp.float32

    # Independent reference: XLA conv on (B, H, S) — exactly the PyTorch op.
    ref = lax.conv_general_dilated(
        x.transpose(0, 2, 1), weight, window_strides=(1,),
        padding=[(PAD, PAD)], dimension_numbers=("NCH", "OIH", "NCH"),
        precision=lax.Precision.HIGHEST,
    ).transpose(0, 2, 1)
    max_err = float(jnp.max(jnp.abs(out - ref)))
    assert max_err < 5e-3, max_err

    print("KERNEL_OK")
</pallas_src>

<mosaic_0001>
module attributes {stable_mosaic.version = 11 : i64} {
  func.func @conv1d_kernel(%arg0: memref<32x32xf32, #tpu.memory_space<vmem>>, %arg1: memref<96x32xf32, #tpu.memory_space<vmem>>, %arg2: memref<32x32xf32, #tpu.memory_space<vmem>>) attributes {dimension_semantics = [], scalar_prefetch = 0 : i64, scratch_operands = 0 : i64, tpu.core_type = #tpu.core_type<tc>} {
    %c0 = arith.constant 0 : index
    %c0_0 = arith.constant 0 : index
    %0 = vector.load %arg0[%c0, %c0_0] : memref<32x32xf32, #tpu.memory_space<vmem>>, vector<32x32xf32>
    %1 = tpu.iota {dimensions = array<i32: 0>} : vector<32x1xi32>
    %c1_i32 = arith.constant 1 : i32
    %2 = tpu.dynamic_rotate %0 by %c1_i32 dim 0 : vector<32x32xf32>, i32 -> vector<32x32xf32>
    %c0_i32 = arith.constant 0 : i32
    %3 = vector.broadcast %c0_i32 : i32 to vector<32x1xi32>
    %4 = arith.cmpi ne, %1, %3 : vector<32x1xi32>
    %c16_i32 = arith.constant 16 : i32
    %5 = vector.broadcast %c16_i32 : i32 to vector<32x1xi32>
    %6 = arith.cmpi ne, %1, %5 : vector<32x1xi32>
    %7 = arith.andi %4, %6 : vector<32x1xi1>
    %cst = arith.constant 0.000000e+00 : f32
    %8 = vector.shape_cast %7 : vector<32x1xi1> to vector<32x1xi1>
    %9 = vector.broadcast %8 : vector<32x1xi1> to vector<32x32xi1>
    %10 = vector.broadcast %cst : f32 to vector<32x32xf32>
    %11 = arith.select %9, %2, %10 : vector<32x32xi1>, vector<32x32xf32>
    %c31_i32 = arith.constant 31 : i32
    %12 = tpu.dynamic_rotate %0 by %c31_i32 dim 0 : vector<32x32xf32>, i32 -> vector<32x32xf32>
    %c15_i32 = arith.constant 15 : i32
    %13 = vector.broadcast %c15_i32 : i32 to vector<32x1xi32>
    %14 = arith.cmpi ne, %1, %13 : vector<32x1xi32>
    %c31_i32_1 = arith.constant 31 : i32
    %15 = vector.broadcast %c31_i32_1 : i32 to vector<32x1xi32>
    %16 = arith.cmpi ne, %1, %15 : vector<32x1xi32>
    %17 = arith.andi %14, %16 : vector<32x1xi1>
    %cst_2 = arith.constant 0.000000e+00 : f32
    %18 = vector.shape_cast %17 : vector<32x1xi1> to vector<32x1xi1>
    %19 = vector.broadcast %18 : vector<32x1xi1> to vector<32x32xi1>
    %20 = vector.broadcast %cst_2 : f32 to vector<32x32xf32>
    %21 = arith.select %19, %12, %20 : vector<32x32xi1>, vector<32x32xf32>
    %22 = tpu.concatenate %11, %0, %21 in 1 : vector<32x32xf32>, vector<32x32xf32>, vector<32x32xf32> -> vector<32x96xf32>
    %c0_3 = arith.constant 0 : index
    %c0_4 = arith.constant 0 : index
    %23 = vector.load %arg1[%c0_3, %c0_4] : memref<96x32xf32, #tpu.memory_space<vmem>>, vector<96x32xf32>
    %cst_5 = arith.constant dense<0.000000e+00> : vector<32x32xf32>
    %24 = tpu.matmul %22, %23, %cst_5 {dimension_numbers = #tpu.dot_dimension_numbers<[1], [0], [0], [1], [0, 0, 1, 1], [], []>} : vector<32x96xf32>, vector<96x32xf32>, vector<32x32xf32> -> vector<32x32xf32>
    %c0_6 = arith.constant 0 : index
    %c0_7 = arith.constant 0 : index
    %25 = vector.load %arg2[%c0_6, %c0_7] : memref<32x32xf32, #tpu.memory_space<vmem>>, vector<32x32xf32>
    tpu.vector_store %arg2[%c0_6, %c0_7], %24 {strides = array<i32>} : memref<32x32xf32, #tpu.memory_space<vmem>>, vector<32x32xf32>,
    return
  }
}

</mosaic_0001>

<llo_original>
// kernel: cnn_forward.1
$region0: #{cnn_forward.1}
  #allocation0 [shape = 'u32[]', space=smem, size = 0x4, offset = 0x4, fixed_abs, tag = 'smem constant byte address 0x4 - core index']
  #allocation1 [shape = 'u32[144,128]{1,0:T(1,128)}', space=vmem, size = 0x12000, scoped, tag = 'internal scratch']
  %s0 = inlined_call_operand.vmem [shape: f32[32,32], index: 0, kind: input, shape index: {}]
  %s1 = inlined_call_operand.vmem [shape: f32[96,32], index: 1, kind: input, shape index: {}]
  %s2 = inlined_call_operand.hbm [shape: f32[32,32], index: 2, kind: output, shape index: {}]
  %s3 = sld [smem:[#allocation0]]
  $region18: #{cnn_forward.1} parent=0
    _
  %s5 = ssub.s32 1, %s3
  %s6 = scalar_select 0, %s5, %s3
  $region1: #{cnn_forward.1} parent=0
    #allocation2 [shape = 'u8[16384]{0}', space=vmem, size = 0x4000, scoped, tag = 'output window, operand 0, single buffered']
    #allocation3 [shape = 's32[1]{0}', space=sflag, size = 0x4, scoped, tag = 'scoped memory for cnn_forward.1']
    %7 = vsyncpa [#allocation3], 0
    // Predicated region
    $region2: #{cnn_forward.1} parent=1 // pred_check
      _
    $region3: #{cnn_forward.1} parent=1 // pred_check_branch
      %9 = sbr.rel (0) target = $region5
    $region4: #{cnn_forward.1} parent=1 // pred_region
      _
    $region5: #{cnn_forward.1} parent=1 // pred_fallthru
      _
    // Predicated region
    $region6: #{cnn_forward.1} parent=1 // pred_check
      _
    $region7: #{cnn_forward.1} parent=1 // pred_check_branch
      %11 = sbr.rel (0) target = $region9
    $region8: #{cnn_forward.1} parent=1 // pred_region
      _
    $region9: #{cnn_forward.1} parent=1 // pred_fallthru
      _
    %v12 = vld [vmem:[%s0] sm:$0xff]
    %v13 = vld [vmem:[%s0 + $0x8] sm:$0xff]
    %v14 = vld [vmem:[%s0 + $0x10] sm:$0xff]
    %v15 = vld [vmem:[%s0 + $0x18] sm:$0xff]
    %v16 = vlaneseq
    %v17 = vshrl.u32 %v16, 7
    %v18 = vadd.s32 %v17, 8
    %v19 = vadd.s32 %v17, 16
    %v20 = vadd.s32 %v17, 24
    %v21 = vrot.slane %v12, 7
    %v22 = vrot.slane %v13, 7
    %v23 = vrot.slane %v14, 7
    %v24 = vrot.slane %v15, 7
    %vm25 = vcmp.lt.s32.totalorder %v17, 1
    %v26 = vsel %vm25, %v23, %v24
    %v27 = vsel %vm25, %v22, %v23
    %v28 = vsel %vm25, %v21, %v22
    %v29 = vsel %vm25, %v24, %v21
    %vm30 = vcmp.ne.s32.totalorder %v17, 0
    %vm31 = vcmp.ne.s32.totalorder %v18, 0
    %vm32 = vcmp.ne.s32.totalorder %v19, 0
    %vm33 = vcmp.ne.s32.totalorder %v20, 0
    %vm34 = vcmp.ne.s32.totalorder %v17, 16
    %vm35 = vcmp.ne.s32.totalorder %v18, 16
    %vm36 = vcmp.ne.s32.totalorder %v19, 16
    %vm37 = vcmp.ne.s32.totalorder %v20, 16
    %vm38 = vmand %vm30, %vm34
    %vm39 = vmand %vm31, %vm35
    %vm40 = vmand %vm32, %vm36
    %vm41 = vmand %vm33, %vm37
    %v42 = vsel %vm38, 1, 0
    %v43 = vsel %vm39, 1, 0
    %v44 = vsel %vm40, 1, 0
    %v45 = vsel %vm41, 1, 0
    %vm46 = vcmp.eq.s32.totalorder %v42, 1
    %vm47 = vcmp.eq.s32.totalorder %v43, 1
    %vm48 = vcmp.eq.s32.totalorder %v44, 1
    %vm49 = vcmp.eq.s32.totalorder %v45, 1
    %v50 = vsel %vm46, %v29, 0.0
    %v51 = vsel %vm47, %v28, 0.0
    %v52 = vsel %vm48, %v27, 0.0
    %v53 = vsel %vm49, %v26, 0.0
    %v54 = vrot.slane %v12, 1
    %v55 = vrot.slane %v13, 1
    %v56 = vrot.slane %v14, 1
    %v57 = vrot.slane %v15, 1
    %vm58 = vcmp.lt.s32.totalorder %v17, 7
    %v59 = vsel %vm58, %v56, %v57
    %v60 = vsel %vm58, %v55, %v56
    %v61 = vsel %vm58, %v54, %v55
    %v62 = vsel %vm58, %v57, %v54
    %vm63 = vcmp.ne.s32.totalorder %v17, 15
    %vm64 = vcmp.ne.s32.totalorder %v18, 15
    %vm65 = vcmp.ne.s32.totalorder %v19, 15
    %vm66 = vcmp.ne.s32.totalorder %v20, 15
    %vm67 = vcmp.ne.s32.totalorder %v17, 31
    %vm68 = vcmp.ne.s32.totalorder %v18, 31
    %vm69 = vcmp.ne.s32.totalorder %v19, 31
    %vm70 = vcmp.ne.s32.totalorder %v20, 31
    %vm71 = vmand %vm63, %vm67
    %vm72 = vmand %vm64, %vm68
    %vm73 = vmand %vm65, %vm69
    %vm74 = vmand %vm66, %vm70
    %v75 = vsel %vm71, 1, 0
    %v76 = vsel %vm72, 1, 0
    %v77 = vsel %vm73, 1, 0
    %v78 = vsel %vm74, 1, 0
    %vm79 = vcmp.eq.s32.totalorder %v75, 1
    %vm80 = vcmp.eq.s32.totalorder %v76, 1
    %vm81 = vcmp.eq.s32.totalorder %v77, 1
    %vm82 = vcmp.eq.s32.totalorder %v78, 1
    %v83 = vsel %vm79, %v61, 0.0
    %v84 = vsel %vm80, %v60, 0.0
    %v85 = vsel %vm81, %v59, 0.0
    %v86 = vsel %vm82, %v62, 0.0
    %91 = vrot.lane.b32.xlu0 %v12, 32
    %v92 = vpop.permute.xlu0 %91
    %93 = vrot.lane.b32.xlu0 %v13, 32
    %v94 = vpop.permute.xlu0 %93
    %95 = vrot.lane.b32.xlu0 %v14, 32
    %v96 = vpop.permute.xlu0 %95
    %97 = vrot.lane.b32.xlu0 %v15, 32
    %v98 = vpop.permute.xlu0 %97
    %107 = vrot.lane.b32.xlu0 %v83, 64
    %v108 = vpop.permute.xlu0 %107
    %109 = vrot.lane.b32.xlu0 %v84, 64
    %v110 = vpop.permute.xlu0 %109
    %111 = vrot.lane.b32.xlu0 %v85, 64
    %v112 = vpop.permute.xlu0 %111
    %113 = vrot.lane.b32.xlu0 %v86, 64
    %v114 = vpop.permute.xlu0 %113
    %vm119 = vcmask 261120
    %v120 = vsel %vm119, %v50, %v92
    %v121 = vsel %vm119, %v51, %v94
    %v122 = vsel %vm119, %v52, %v96
    %v123 = vsel %vm119, %v53, %v98
    %vm124 = vcmask 523264
    %v125 = vsel %vm124, %v120, %v108
    %v126 = vsel %vm124, %v121, %v110
    %v127 = vsel %vm124, %v122, %v112
    %v128 = vsel %vm124, %v123, %v114
    %v129 = vld [vmem:[%s1] sm:$0xff]
    %v130 = vld [vmem:[%s1 + $0x8] sm:$0xff]
    %v131 = vld [vmem:[%s1 + $0x10] sm:$0xff]
    %v132 = vld [vmem:[%s1 + $0x18] sm:$0xff]
    %v133 = vld [vmem:[%s1 + $0x20] sm:$0xff]
    %v134 = vld [vmem:[%s1 + $0x28] sm:$0xff]
    %v135 = vld [vmem:[%s1 + $0x30] sm:$0xff]
    %v136 = vld [vmem:[%s1 + $0x38] sm:$0xff]
    %v137 = vld [vmem:[%s1 + $0x40] sm:$0xff]
    %v138 = vld [vmem:[%s1 + $0x48] sm:$0xff]
    %v139 = vld [vmem:[%s1 + $0x50] sm:$0xff]
    %v140 = vld [vmem:[%s1 + $0x58] sm:$0xff]
    %vm141 = vcmask 785408
    %v143 = vsel %vm141, %v125, 0
    %v146 = vsel %vm141, %v126, 0
    %v149 = vsel %vm141, %v127, 0
    %v152 = vsel %vm141, %v128, 0
    %154 = vmatprep.subr.mxu0 0.0
    %155 = vmatpush1.msra.mxu0 %v129
    %156 = vmatprep.subr.mxu0 0.0
    %157 = vmatpush1.msra.mxu0 %v130
    %158 = vmatprep.subr.mxu0 0.0
    %159 = vmatpush1.msra.mxu0 %v131
    %160 = vmatprep.subr.mxu0 0.0
    %161 = vmatpush1.msra.mxu0 %v132
    %162 = vmatprep.subr.mxu0 0.0
    %163 = vmatpush1.msra.mxu0 %v133
    %164 = vmatprep.subr.mxu0 0.0
    %165 = vmatpush1.msra.mxu0 %v134
    %166 = vmatprep.subr.mxu0 0.0
    %167 = vmatpush1.msra.mxu0 %v135
    %168 = vmatprep.subr.mxu0 0.0
    %169 = vmatpush1.msra.mxu0 %v136
    %170 = vmatprep.subr.mxu0 0.0
    %171 = vmatpush1.msra.mxu0 %v137
    %172 = vmatprep.subr.mxu0 0.0
    %173 = vmatpush1.msra.mxu0 %v138
    %174 = vmatprep.subr.mxu0 0.0
    %175 = vmatpush1.msra.mxu0 %v139
    %176 = vmatprep.subr.mxu0 0.0
    %177 = vmatpush1.msra.mxu0 %v140
    %178 = vmatprep.subr.mxu0 0.0
    %179 = vmatpush1.msra.mxu0 0.0
    %180 = vmatprep.subr.mxu0 0.0
    %181 = vmatpush1.msra.mxu0 0.0
    %182 = vmatprep.subr.mxu0 0.0
    %183 = vmatpush1.msra.mxu0 0.0
    %184 = vmatprep.subr.mxu0 0.0
    %185 = vmatpush1.msra.mxu0 0.0
    %186 = vmatprep.subr.mxu0 0.0
    %187 = vmatpush1.msra.mxu0 0.0
    %188 = vmatprep.subr.mxu0 0.0
    %189 = vmatpush1.msra.mxu0 0.0
    %190 = vmatprep.subr.mxu0 0.0
    %191 = vmatpush1.msra.mxu0 0.0
    %192 = vmatprep.subr.mxu0 0.0
    %193 = vmatpush1.msra.mxu0 0.0
    %194 = vmatprep.subr.mxu0 0.0
    %195 = vmatpush1.msra.mxu0 0.0
    %196 = vmatprep.subr.mxu0 0.0
    %197 = vmatpush1.msra.mxu0 0.0
    %198 = vmatprep.subr.mxu0 0.0
    %199 = vmatpush1.msra.mxu0 0.0
    %200 = vmatprep.subr.mxu0 0.0
    %201 = vmatpush1.msra.mxu0 0.0
    %202 = vmatprep.subr.mxu0 0.0
    %203 = vmatpush1.msra.mxu0 0.0
    %204 = vmatprep.subr.mxu0 0.0
    %205 = vmatpush1.msra.mxu0 0.0
    %206 = vmatprep.subr.mxu0 0.0
    %207 = vmatpush1.msra.mxu0 0.0
    %208 = vmatprep.subr.mxu0 0.0
    %209 = vmatpush1.msra.mxu0 0.0
    %210 = vmatprep.subr.mxu0 0.0
    %211 = vmatpush1.msra.mxu0 0.0
    %212 = vmatprep.subr.mxu0 0.0
    %213 = vmatpush1.msra.mxu0 0.0
    %214 = vmatprep.subr.mxu0 0.0
    %215 = vmatpush1.msra.mxu0 0.0
    %216 = vmatprep.subr.mxu0 0.0
    %217 = vmatpush1.msra.mxu0 0.0
    %218 = vmatprep.mubr.f32.mxu0 0.0
    %219 = vmatmul.mubr.f32.gmra.mrb[0].mxu0 %v143
    %v220 = vpop.f32.mrb[0].mxu0
    %v221 = vadd.f32 0.0, %v220
    %v222 = vpop.f32.mrb[0].mxu0
    %223 = vmatprep.mubr.f32.mxu0 0.0
    %224 = vmatmul.mubr.f32.gmra.mrb[0].mxu0 %v146
    %v225 = vpop.f32.mrb[0].mxu0
    %v226 = vadd.f32 0.0, %v225
    %v227 = vpop.f32.mrb[0].mxu0
    %228 = vmatprep.mubr.f32.mxu0 0.0
    %229 = vmatmul.mubr.f32.gmra.mrb[0].mxu0 %v149
    %v230 = vpop.f32.mrb[0].mxu0
    %v231 = vadd.f32 0.0, %v230
    %v232 = vpop.f32.mrb[0].mxu0
    %233 = vmatprep.mubr.f32.mxu0 0.0
    %234 = vmatmul.mubr.f32.gmra.mrb[0].mxu0 %v152
    %v235 = vpop.f32.mrb[0].mxu0
    %v236 = vadd.f32 0.0, %v235
    %v237 = vpop.f32.mrb[0].mxu0
    %238 = vdwg.mxu0
    %239 = vst.msk [vmem:[#allocation2] sm:$0xff] %vm119, %v221
    %240 = vst.msk [vmem:[#allocation2 + $0x8] sm:$0xff] %vm119, %v226
    %241 = vst.msk [vmem:[#allocation2 + $0x10] sm:$0xff] %vm119, %v231
    %242 = vst.msk [vmem:[#allocation2 + $0x18] sm:$0xff] %vm119, %v236
    // Predicated region
    $region10: #{cnn_forward.1} parent=1 // pred_check
      _
    $region11: #{cnn_forward.1} parent=1 // pred_check_branch
      %244 = sbr.rel (0) target = $region13
    $region12: #{cnn_forward.1} parent=1 // pred_region
      %s246 = ssub.s32 512, 512
      %247 = vsyncadd [#allocation3], %s246
      %s248 = sshll.u32 [#allocation2], 4
      %s249 = int_to_ptr.vmem [resolvable:$true] %s248
      %254 = dma.vmem_to_hbm [thread:$0]  %s249, 512, %s2, [#allocation3], 128, 128, 8
    $region13: #{cnn_forward.1} parent=1 // pred_fallthru
      _
    // Predicated region
    $region14: #{cnn_forward.1} parent=1 // pred_check
      _
    $region15: #{cnn_forward.1} parent=1 // pred_check_branch
      %256 = sbr.rel (0) target = $region17
    $region16: #{cnn_forward.1} parent=1 // pred_region
      %257 = dma.done [#allocation3], 512
    $region17: #{cnn_forward.1} parent=1 // pred_fallthru
      _
    %258 = vsyncpa [#allocation3], 1

</llo_original>
